<compile_context>
chip_gen: v7x
topology: tpu7x:2x2x1
jax: 0.10.0
libtpu: 0.0.40
codegen_flags: <defaults>
</compile_context>

<pallas_src>
import functools

import jax
import jax.numpy as jnp
from jax.experimental import pallas as pl
from jax.experimental.pallas import tpu as pltpu


def _round_up(x, m):
    return ((x + m - 1) // m) * m


def _vmem_capacity_bytes():
    try:
        info = pltpu.get_tpu_info()
        cap = getattr(info, "vmem_capacity_bytes", None)
        if cap:
            return int(cap)
    except Exception:
        pass
    return 64 << 20  # conservative default (v7x per-TensorCore VMEM)


def _vmem_estimate(tm, tk, H, xb, wb, rb, ob, nk):
    est = (2 * tm * tk * xb      # activations (double-buffered, HBM dtype)
           + 2 * tk * H * wb     # weight tile (double-buffered)
           + 2 * tm * H * rb     # residual rows
           + 2 * tm * H * ob     # output rows
           + 6 * H * 4)          # bias / gamma / beta
    if nk > 1:
        est += tm * H * 4        # f32 accumulator scratch
    return est


def _pick_tiles(M, H, xb, wb, rb, ob, vmem_budget, row_tile, k_tile, align):
    """Pick (tm, tk, nk) that fit the VMEM budget, preferring tk == H and large tm."""
    tm_max = max(align, min(_round_up(row_tile, align), _round_up(M, align)))

    if k_tile is not None:
        tk_cands = [k_tile]
    else:
        tk_cands = [H] + [t for t in (2048, 1024, 512, 256, 128)
                          if t < H and H % t == 0]

    def tm_cands(floor):
        cands, t = [], tm_max
        while t >= floor:
            cands.append(t)
            nt = _round_up(max(t // 2, floor), align)
            if nt >= t:
                break
            t = nt
        return cands

    # First pass: keep tm >= 256 (unless the problem is smaller); prefer big tk.
    tm_floor_pref = min(tm_max, max(align, 256))
    for floor in (tm_floor_pref, align):
        for tk in tk_cands:
            nk = H // tk
            for t in tm_cands(floor):
                if _vmem_estimate(t, tk, H, xb, wb, rb, ob, nk) <= vmem_budget:
                    return t, tk, nk
    tk = tk_cands[-1]
    return align, tk, H // tk


# ---------------------------------------------------------------------------
# Kernels
# ---------------------------------------------------------------------------
def _layer_norm_f32(h, g_ref, beta_ref, eps):
    mean = jnp.mean(h, axis=-1, keepdims=True)
    c = h - mean
    var = jnp.mean(c * c, axis=-1, keepdims=True)
    y = c * jax.lax.rsqrt(var + eps)
    return y * g_ref[...].astype(jnp.float32) + beta_ref[...].astype(jnp.float32)


def _ffn_fused_kernel(x_ref, res_ref, w_ref, b_ref, g_ref, beta_ref, o_ref, *,
                      eps, mm_dtype):
    """nk == 1 fast path: dot + bias + residual + LayerNorm, no scratch."""
    x = x_ref[...]
    if mm_dtype is not None:
        x = x.astype(mm_dtype)          # cast on the VPU, hidden under MXU work
    h = jnp.dot(x, w_ref[...], preferred_element_type=jnp.float32)
    # dropout == identity in eval mode.
    h = h + b_ref[...].astype(jnp.float32) + res_ref[...].astype(jnp.float32)
    o_ref[...] = _layer_norm_f32(h, g_ref, beta_ref, eps).astype(o_ref.dtype)


def _ffn_ktiled_kernel(x_ref, res_ref, w_ref, b_ref, g_ref, beta_ref, o_ref,
                       acc_ref, *, eps, mm_dtype):
    """K-tiled path: f32 accumulator in VMEM, LayerNorm epilogue on the last k."""
    k = pl.program_id(1)
    nk = pl.num_programs(1)

    x = x_ref[...]
    if mm_dtype is not None:
        x = x.astype(mm_dtype)
    partial = jnp.dot(x, w_ref[...], preferred_element_type=jnp.float32)

    @pl.when(k == 0)
    def _():
        # Initialize with the first dot result (no zero-fill + RMW) and fold in
        # bias + residual (dropout == identity in eval) so the epilogue is LN-only.
        acc_ref[...] = (partial + b_ref[...].astype(jnp.float32)
                        + res_ref[...].astype(jnp.float32))

    @pl.when(k > 0)
    def _():
        acc_ref[...] += partial

    @pl.when(k == nk - 1)
    def _():
        o_ref[...] = _layer_norm_f32(acc_ref[...], g_ref, beta_ref,
                                     eps).astype(o_ref.dtype)


# ---------------------------------------------------------------------------
# Wrapper
# ---------------------------------------------------------------------------
def feed_forward(hidden_states, input_tensor, w, b, gamma, beta, *,
                 layer_norm_eps=1e-12, row_tile=512, k_tile=None,
                 matmul_dtype=jnp.bfloat16, donate_residual=False):
    """hidden_states, input_tensor: [B, S, H]; w: [H, H] stored (in, out);
    b / gamma / beta: [H]."""
    B, S, H = hidden_states.shape
    out_dtype = hidden_states.dtype
    M = B * S

    mm_dtype = matmul_dtype
    # Activations / residual stream in their HBM dtype; the matmul cast happens
    # in-kernel. Only the weight is pre-cast (amortized over num_m re-streams).
    x2d = hidden_states.reshape(M, H)
    r2d = input_tensor.reshape(M, H)
    w2d = w.astype(mm_dtype) if mm_dtype is not None else w
    b2d = b.reshape(1, H)
    g2d = gamma.reshape(1, H)
    beta2d = beta.reshape(1, H)

    xb = x2d.dtype.itemsize
    wb = w2d.dtype.itemsize
    rb = r2d.dtype.itemsize
    ob = jnp.dtype(out_dtype).itemsize

    # ---- device-aware tiling ----------------------------------------------
    align = 16 if (mm_dtype is not None and jnp.dtype(mm_dtype).itemsize == 2) else 8
    vmem_cap = _vmem_capacity_bytes()
    vmem_budget = max(32 << 20, (vmem_cap * 7) // 8)

    tm, tk, nk = _pick_tiles(M, H, xb, wb, rb, ob, vmem_budget,
                             row_tile, k_tile, align)
    assert H % tk == 0, "k tile must divide the hidden size"
    num_m = pl.cdiv(M, tm)   # ragged last block handled by Pallas masking

    vmem_est = _vmem_estimate(tm, tk, H, xb, wb, rb, ob, nk)
    vmem_limit = int(min(max(vmem_est + (4 << 20), 32 << 20),
                         vmem_cap - (8 << 20)))

    cost = pl.CostEstimate(
        flops=2 * M * H * H,
        transcendentals=0,
        bytes_accessed=M * H * (xb + rb + ob) + num_m * H * H * wb + 3 * H * 4)

    if nk == 1:
        kernel = functools.partial(_ffn_fused_kernel,
                                   eps=float(layer_norm_eps), mm_dtype=mm_dtype)
        grid = (num_m,)
        in_specs = [
            pl.BlockSpec((tm, H), lambda i: (i, 0)),   # activations (HBM dtype)
            pl.BlockSpec((tm, H), lambda i: (i, 0)),   # residual rows
            pl.BlockSpec((H, H), lambda i: (0, 0)),    # dense weight (in, out)
            pl.BlockSpec((1, H), lambda i: (0, 0)),    # dense bias
            pl.BlockSpec((1, H), lambda i: (0, 0)),    # LN gamma
            pl.BlockSpec((1, H), lambda i: (0, 0)),    # LN beta
        ]
        out_spec = pl.BlockSpec((tm, H), lambda i: (i, 0))
        scratch = []
        dims = ("parallel",)
    else:
        kernel = functools.partial(_ffn_ktiled_kernel,
                                   eps=float(layer_norm_eps), mm_dtype=mm_dtype)
        grid = (num_m, nk)
        in_specs = [
            pl.BlockSpec((tm, tk), lambda i, k: (i, k)),
            pl.BlockSpec((tm, H), lambda i, k: (i, 0)),
            pl.BlockSpec((tk, H), lambda i, k: (k, 0)),
            pl.BlockSpec((1, H), lambda i, k: (0, 0)),
            pl.BlockSpec((1, H), lambda i, k: (0, 0)),
            pl.BlockSpec((1, H), lambda i, k: (0, 0)),
        ]
        out_spec = pl.BlockSpec((tm, H), lambda i, k: (i, 0))
        scratch = [pltpu.VMEM((tm, H), jnp.float32)]
        dims = ("parallel", "arbitrary")

    io_aliases = {}
    if donate_residual and r2d.dtype == jnp.dtype(out_dtype):
        io_aliases = {1: 0}   # residual buffer reused as the output (caller donates)

    out2d = pl.pallas_call(
        kernel,
        out_shape=jax.ShapeDtypeStruct((M, H), out_dtype),
        grid_spec=pltpu.PrefetchScalarGridSpec(
            num_scalar_prefetch=0,
            grid=grid,
            in_specs=in_specs,
            out_specs=out_spec,
            scratch_shapes=scratch),
        compiler_params=pltpu.CompilerParams(
            dimension_semantics=dims,
            vmem_limit_bytes=vmem_limit),
        cost_estimate=cost,
        input_output_aliases=io_aliases,
    )(x2d, r2d, w2d, b2d, g2d, beta2d)

    return out2d.reshape(B, S, H)


# ---------------------------------------------------------------------------
# Reference + tests
# ---------------------------------------------------------------------------
def _reference(hidden_states, input_tensor, w, b, gamma, beta, eps):
    """Plain-JAX f32 reference with the same semantics as the torch module (eval)."""
    H = hidden_states.shape[-1]
    h = hidden_states.reshape(-1, H).astype(jnp.float32) @ w.astype(jnp.float32) + b
    h = h + input_tensor.reshape(-1, H).astype(jnp.float32)
    mu = h.mean(axis=-1, keepdims=True)
    var = ((h - mu) ** 2).mean(axis=-1, keepdims=True)
    y = (h - mu) / jnp.sqrt(var + eps) * gamma + beta
    return y.reshape(hidden_states.shape)


if __name__ == "__main__":
    eps = 1e-12
    key = jax.random.PRNGKey(0)

    # --- Test 1: module smoke-test shape (batch=2, seq=8, hidden=32) --------
    B, S, H = 2, 8, 32
    k1, k2, k3, k4 = jax.random.split(key, 4)
    hidden_states = jax.random.normal(k1, (B, S, H), dtype=jnp.float32)
    input_tensor = jax.random.normal(k2, (B, S, H), dtype=jnp.float32)
    # nn.Linear-like init, stored as [in, out] (transpose of torch's [out, in]).
    w = jax.random.uniform(k3, (H, H), minval=-1.0, maxval=1.0,
                           dtype=jnp.float32) / jnp.sqrt(float(H))
    bias = jax.random.uniform(k4, (H,), minval=-1.0, maxval=1.0,
                              dtype=jnp.float32) / jnp.sqrt(float(H))
    gamma = jnp.ones((H,), dtype=jnp.float32)
    beta = jnp.zeros((H,), dtype=jnp.float32)

    ref = _reference(hidden_states, input_tensor, w, bias, gamma, beta, eps)

    # Full-precision path (f32 matmul) -> tight tolerance.
    out_f32 = feed_forward(hidden_states, input_tensor, w, bias, gamma, beta,
                           layer_norm_eps=eps, matmul_dtype=None)
    out_f32 = jax.block_until_ready(out_f32)
    assert out_f32.shape == (B, S, H)
    assert jnp.allclose(out_f32, ref, atol=1e-5, rtol=1e-5), "f32 path mismatch"

    # Default path (in-kernel bf16 cast, f32 accumulation + epilogue) -> loose tol.
    out_bf16 = feed_forward(hidden_states, input_tensor, w, bias, gamma, beta,
                            layer_norm_eps=eps)
    out_bf16 = jax.block_until_ready(out_bf16)
    assert jnp.allclose(out_bf16, ref, atol=5e-2, rtol=5e-2), "bf16 path mismatch"

    # --- Test 2: ragged row tail (M < tm) + K-tiled accumulator path (nk > 1) ---
    B2, S2, H2 = 2, 3, 256
    k5, k6, k7, k8, k9, k10 = jax.random.split(jax.random.PRNGKey(1), 6)
    hs2 = jax.random.normal(k5, (B2, S2, H2), dtype=jnp.float32)
    it2 = jax.random.normal(k6, (B2, S2, H2), dtype=jnp.float32)
    w2 = jax.random.uniform(k7, (H2, H2), minval=-1.0, maxval=1.0,
                            dtype=jnp.float32) / jnp.sqrt(float(H2))
    b2 = jax.random.uniform(k8, (H2,), minval=-1.0, maxval=1.0,
                            dtype=jnp.float32) / jnp.sqrt(float(H2))
    g2 = 1.0 + 0.1 * jax.random.normal(k9, (H2,), dtype=jnp.float32)
    bt2 = 0.1 * jax.random.normal(k10, (H2,), dtype=jnp.float32)

    ref2 = _reference(hs2, it2, w2, b2, g2, bt2, eps)
    out2 = feed_forward(hs2, it2, w2, b2, g2, bt2, layer_norm_eps=eps,
                        k_tile=128)  # force nk = 2 to exercise the accumulator
    out2 = jax.block_until_ready(out2)
    assert out2.shape == (B2, S2, H2)
    assert jnp.allclose(out2, ref2, atol=5e-2, rtol=5e-2), "K-tiled path mismatch"

    # --- Test 3: multiple row blocks with a ragged last block (masked write),
    # --- fused nk == 1 path, full-f32 for a tight check of the masking.
    B3, S3, H3 = 2, 20, 128
    k11, k12, k13, k14 = jax.random.split(jax.random.PRNGKey(2), 4)
    hs3 = jax.random.normal(k11, (B3, S3, H3), dtype=jnp.float32)
    it3 = jax.random.normal(k12, (B3, S3, H3), dtype=jnp.float32)
    w3 = jax.random.uniform(k13, (H3, H3), minval=-1.0, maxval=1.0,
                            dtype=jnp.float32) / jnp.sqrt(float(H3))
    b3 = jax.random.uniform(k14, (H3,), minval=-1.0, maxval=1.0,
                            dtype=jnp.float32) / jnp.sqrt(float(H3))
    g3 = jnp.ones((H3,), dtype=jnp.float32)
    bt3 = jnp.zeros((H3,), dtype=jnp.float32)

    ref3 = _reference(hs3, it3, w3, b3, g3, bt3, eps)
    out3 = feed_forward(hs3, it3, w3, b3, g3, bt3, layer_norm_eps=eps,
                        row_tile=16, matmul_dtype=None)  # 3 row blocks, ragged tail
    out3 = jax.block_until_ready(out3)
    assert out3.shape == (B3, S3, H3)
    assert jnp.allclose(out3, ref3, atol=1e-5, rtol=1e-5), "ragged-tail path mismatch"

    print("KERNEL_OK")
</pallas_src>

<mosaic_0001>
module attributes {stable_mosaic.version = 11 : i64} {
  func.func @_ffn_fused_kernel(%arg0: i32, %arg1: memref<16x32xf32, #tpu.memory_space<vmem>>, %arg2: memref<16x32xf32, #tpu.memory_space<vmem>>, %arg3: memref<32x32xf32, #tpu.memory_space<vmem>>, %arg4: memref<1x32xf32, #tpu.memory_space<vmem>>, %arg5: memref<1x32xf32, #tpu.memory_space<vmem>>, %arg6: memref<1x32xf32, #tpu.memory_space<vmem>>, %arg7: memref<16x32xf32, #tpu.memory_space<vmem>>) attributes {dimension_semantics = [#tpu.dimension_semantics<parallel>], iteration_bounds = array<i64: 1>, scalar_prefetch = 0 : i64, scratch_operands = 0 : i64, tpu.core_type = #tpu.core_type<tc>, window_params = [{transform_indices = @transform_0, window_bounds = array<i64: 16, 32>}, {transform_indices = @transform_1, window_bounds = array<i64: 16, 32>}, {pipeline_mode = #tpu.pipeline_mode<synchronous>, transform_indices = @transform_2, window_bounds = array<i64: 32, 32>}, {pipeline_mode = #tpu.pipeline_mode<synchronous>, transform_indices = @transform_3, window_bounds = array<i64: 1, 32>}, {pipeline_mode = #tpu.pipeline_mode<synchronous>, transform_indices = @transform_4, window_bounds = array<i64: 1, 32>}, {pipeline_mode = #tpu.pipeline_mode<synchronous>, transform_indices = @transform_5, window_bounds = array<i64: 1, 32>}, {transform_indices = @transform_6, window_bounds = array<i64: 16, 32>}]} {
    %c0 = arith.constant 0 : index
    %c0_0 = arith.constant 0 : index
    %0 = vector.load %arg1[%c0, %c0_0] : memref<16x32xf32, #tpu.memory_space<vmem>>, vector<16x32xf32>
    %c0_1 = arith.constant 0 : index
    %c0_2 = arith.constant 0 : index
    %1 = vector.load %arg3[%c0_1, %c0_2] : memref<32x32xf32, #tpu.memory_space<vmem>>, vector<32x32xf32>
    %cst = arith.constant dense<0.000000e+00> : vector<16x32xf32>
    %2 = tpu.matmul %0, %1, %cst {dimension_numbers = #tpu.dot_dimension_numbers<[1], [0], [0], [1], [0, 0, 1, 1], [], []>} : vector<16x32xf32>, vector<32x32xf32>, vector<16x32xf32> -> vector<16x32xf32>
    %c0_3 = arith.constant 0 : index
    %c0_4 = arith.constant 0 : index
    %3 = vector.load %arg4[%c0_3, %c0_4] : memref<1x32xf32, #tpu.memory_space<vmem>>, vector<1x32xf32>
    %4 = vector.broadcast %3 : vector<1x32xf32> to vector<16x32xf32>
    %5 = arith.addf %2, %4 : vector<16x32xf32>
    %c0_5 = arith.constant 0 : index
    %c0_6 = arith.constant 0 : index
    %6 = vector.load %arg2[%c0_5, %c0_6] : memref<16x32xf32, #tpu.memory_space<vmem>>, vector<16x32xf32>
    %7 = arith.addf %5, %6 : vector<16x32xf32>
    %cst_7 = arith.constant dense<0.000000e+00> : vector<16xf32>
    %8 = vector.multi_reduction <add>, %7, %cst_7 [1] : vector<16x32xf32> to vector<16xf32>
    %9 = vector.shape_cast %8 : vector<16xf32> to vector<16x1xf32>
    %cst_8 = arith.constant 3.200000e+01 : f32
    %10 = vector.broadcast %cst_8 : f32 to vector<16x1xf32>
    %11 = arith.divf %9, %10 : vector<16x1xf32>
    %12 = vector.broadcast %11 : vector<16x1xf32> to vector<16x32xf32>
    %13 = arith.subf %7, %12 : vector<16x32xf32>
    %14 = arith.mulf %13, %13 : vector<16x32xf32>
    %cst_9 = arith.constant dense<0.000000e+00> : vector<16xf32>
    %15 = vector.multi_reduction <add>, %14, %cst_9 [1] : vector<16x32xf32> to vector<16xf32>
    %16 = vector.shape_cast %15 : vector<16xf32> to vector<16x1xf32>
    %cst_10 = arith.constant 3.200000e+01 : f32
    %17 = vector.broadcast %cst_10 : f32 to vector<16x1xf32>
    %18 = arith.divf %16, %17 : vector<16x1xf32>
    %cst_11 = arith.constant 9.99999996E-13 : f32
    %19 = vector.broadcast %cst_11 : f32 to vector<16x1xf32>
    %20 = arith.addf %18, %19 : vector<16x1xf32>
    %21 = math.rsqrt %20 : vector<16x1xf32>
    %22 = vector.broadcast %21 : vector<16x1xf32> to vector<16x32xf32>
    %23 = arith.mulf %13, %22 : vector<16x32xf32>
    %c0_12 = arith.constant 0 : index
    %c0_13 = arith.constant 0 : index
    %24 = vector.load %arg5[%c0_12, %c0_13] : memref<1x32xf32, #tpu.memory_space<vmem>>, vector<1x32xf32>
    %25 = vector.broadcast %24 : vector<1x32xf32> to vector<16x32xf32>
    %26 = arith.mulf %23, %25 : vector<16x32xf32>
    %c0_14 = arith.constant 0 : index
    %c0_15 = arith.constant 0 : index
    %27 = vector.load %arg6[%c0_14, %c0_15] : memref<1x32xf32, #tpu.memory_space<vmem>>, vector<1x32xf32>
    %28 = vector.broadcast %27 : vector<1x32xf32> to vector<16x32xf32>
    %29 = arith.addf %26, %28 : vector<16x32xf32>
    %c0_16 = arith.constant 0 : index
    %c0_17 = arith.constant 0 : index
    %30 = vector.load %arg7[%c0_16, %c0_17] : memref<16x32xf32, #tpu.memory_space<vmem>>, vector<16x32xf32>
    tpu.vector_store %arg7[%c0_16, %c0_17], %29 {strides = array<i32>} : memref<16x32xf32, #tpu.memory_space<vmem>>, vector<16x32xf32>,
    return
  }
  func.func @transform_0(%arg0: i32) -> (i32, i32) {
    %c0_i32 = arith.constant 0 : i32
    %c0_i32_0 = arith.constant 0 : i32
    return %arg0, %c0_i32 : i32, i32
  }
  func.func @transform_1(%arg0: i32) -> (i32, i32) {
    %c0_i32 = arith.constant 0 : i32
    %c0_i32_0 = arith.constant 0 : i32
    return %arg0, %c0_i32 : i32, i32
  }
  func.func @transform_2(%arg0: i32) -> (i32, i32) {
    %c0_i32 = arith.constant 0 : i32
    %c0_i32_0 = arith.constant 0 : i32
    %c0_i32_1 = arith.constant 0 : i32
    return %c0_i32, %c0_i32_0 : i32, i32
  }
  func.func @transform_3(%arg0: i32) -> (i32, i32) {
    %c0_i32 = arith.constant 0 : i32
    %c0_i32_0 = arith.constant 0 : i32
    %c0_i32_1 = arith.constant 0 : i32
    return %c0_i32, %c0_i32_0 : i32, i32
  }
  func.func @transform_4(%arg0: i32) -> (i32, i32) {
    %c0_i32 = arith.constant 0 : i32
    %c0_i32_0 = arith.constant 0 : i32
    %c0_i32_1 = arith.constant 0 : i32
    return %c0_i32, %c0_i32_0 : i32, i32
  }
  func.func @transform_5(%arg0: i32) -> (i32, i32) {
    %c0_i32 = arith.constant 0 : i32
    %c0_i32_0 = arith.constant 0 : i32
    %c0_i32_1 = arith.constant 0 : i32
    return %c0_i32, %c0_i32_0 : i32, i32
  }
  func.func @transform_6(%arg0: i32) -> (i32, i32) {
    %c0_i32 = arith.constant 0 : i32
    %c0_i32_0 = arith.constant 0 : i32
    return %arg0, %c0_i32 : i32, i32
  }
}

</mosaic_0001>

<llo_original>
// kernel: tpu_custom_call.1
$region0: #{tpu_custom_call.1}
  #allocation0 [shape = 'u32[]', space=smem, size = 0x4, offset = 0x4, fixed_abs, tag = 'smem constant byte address 0x4 - core index']
  #allocation1 [shape = 'u32[144,128]{1,0:T(1,128)}', space=vmem, size = 0x12000, scoped, tag = 'internal scratch']
  %s0 = inlined_call_operand.hbm [shape: f32[16,32], index: 0, kind: input, shape index: {}]
  %s1 = inlined_call_operand.hbm [shape: f32[16,32], index: 1, kind: input, shape index: {}]
  %s2 = inlined_call_operand.hbm [shape: f32[32,32], index: 2, kind: input, shape index: {}]
  %s3 = inlined_call_operand.vmem [shape: f32[1,32], index: 3, kind: input, shape index: {}]
  %s4 = inlined_call_operand.vmem [shape: f32[1,32], index: 4, kind: input, shape index: {}]
  %s5 = inlined_call_operand.vmem [shape: f32[1,32], index: 5, kind: input, shape index: {}]
  %s6 = inlined_call_operand.hbm [shape: f32[16,32], index: 6, kind: output, shape index: {}]
  %s7 = sld [smem:[#allocation0]]
  $region46: #{tpu_custom_call.1} parent=0
    _
  %s9 = ssub.s32 1, %s7
  %s10 = scalar_select 0, %s9, %s7
  $region1: #{tpu_custom_call.1} parent=0
    #allocation2 [shape = 'u8[8192]{0}', space=vmem, size = 0x2000, scoped, tag = 'input window, operand 0, single buffered']
    #allocation3 [shape = 's32[1]{0}', space=sflag, size = 0x4, scoped, tag = 'scoped memory for tpu_custom_call.1']
    #allocation4 [shape = 's32[1]{0}', space=sflag, size = 0x4, scoped, tag = 'scoped memory for tpu_custom_call.1']
    #allocation5 [shape = 'u8[8192]{0}', space=vmem, size = 0x2000, scoped, tag = 'input window, operand 1, single buffered']
    #allocation6 [shape = 's32[1]{0}', space=sflag, size = 0x4, scoped, tag = 'scoped memory for tpu_custom_call.1']
    #allocation7 [shape = 'u8[16384]{0}', space=vmem, size = 0x4000, scoped, tag = 'input window, operand 2, single buffered']
    #allocation8 [shape = 'u8[8192]{0}', space=vmem, size = 0x2000, scoped, tag = 'output window, operand 0, single buffered']
    %11 = vsyncpa [#allocation3], 0
    %12 = vsyncpa [#allocation6], 0
    %13 = vsyncpa [#allocation4], 0
    // Predicated region
    $region2: #{tpu_custom_call.1} parent=1 // pred_check
      _
    $region3: #{tpu_custom_call.1} parent=1 // pred_check_branch
      %15 = sbr.rel (0) target = $region5
    $region4: #{tpu_custom_call.1} parent=1 // pred_region
      %s17 = ssub.s32 256, 256
      %18 = vsyncadd [#allocation3], %s17
      %s19 = sshll.u32 [#allocation2], 4
      %s20 = int_to_ptr.vmem [resolvable:$true] %s19
      %25 = dma.hbm_to_vmem [thread:$0]  %s0, 256, %s20, [#allocation3], 128, 128, 8
    $region5: #{tpu_custom_call.1} parent=1 // pred_fallthru
      _
    // Predicated region
    $region6: #{tpu_custom_call.1} parent=1 // pred_check
      _
    $region7: #{tpu_custom_call.1} parent=1 // pred_check_branch
      %27 = sbr.rel (0) target = $region9
    $region8: #{tpu_custom_call.1} parent=1 // pred_region
      %s29 = ssub.s32 256, 256
      %30 = vsyncadd [#allocation6], %s29
      %s31 = sshll.u32 [#allocation5], 4
      %s32 = int_to_ptr.vmem [resolvable:$true] %s31
      %37 = dma.hbm_to_vmem [thread:$0]  %s1, 256, %s32, [#allocation6], 128, 128, 8
    $region9: #{tpu_custom_call.1} parent=1 // pred_fallthru
      _
    // Predicated region
    $region10: #{tpu_custom_call.1} parent=1 // pred_check
      _
    $region11: #{tpu_custom_call.1} parent=1 // pred_check_branch
      %39 = sbr.rel (0) target = $region13
    $region12: #{tpu_custom_call.1} parent=1 // pred_region
      %s41 = ssub.s32 512, 512
      %42 = vsyncadd [#allocation6], %s41
      %s43 = sshll.u32 [#allocation7], 4
      %s44 = int_to_ptr.vmem [resolvable:$true] %s43
      %49 = dma.hbm_to_vmem [thread:$0]  %s2, 512, %s44, [#allocation6], 128, 128, 8
    $region13: #{tpu_custom_call.1} parent=1 // pred_fallthru
      _
    // Predicated region
    $region14: #{tpu_custom_call.1} parent=1 // pred_check
      _
    $region15: #{tpu_custom_call.1} parent=1 // pred_check_branch
      %51 = sbr.rel (0) target = $region17
    $region16: #{tpu_custom_call.1} parent=1 // pred_region
      _
    $region17: #{tpu_custom_call.1} parent=1 // pred_fallthru
      _
    // Predicated region
    $region18: #{tpu_custom_call.1} parent=1 // pred_check
      _
    $region19: #{tpu_custom_call.1} parent=1 // pred_check_branch
      %53 = sbr.rel (0) target = $region21
    $region20: #{tpu_custom_call.1} parent=1 // pred_region
      _
    $region21: #{tpu_custom_call.1} parent=1 // pred_fallthru
      _
    // Predicated region
    $region22: #{tpu_custom_call.1} parent=1 // pred_check
      _
    $region23: #{tpu_custom_call.1} parent=1 // pred_check_branch
      %55 = sbr.rel (0) target = $region25
    $region24: #{tpu_custom_call.1} parent=1 // pred_region
      _
    $region25: #{tpu_custom_call.1} parent=1 // pred_fallthru
      _
    // Predicated region
    $region26: #{tpu_custom_call.1} parent=1 // pred_check
      _
    $region27: #{tpu_custom_call.1} parent=1 // pred_check_branch
      %57 = sbr.rel (0) target = $region29
    $region28: #{tpu_custom_call.1} parent=1 // pred_region
      %58 = dma.done [#allocation3], 256
    $region29: #{tpu_custom_call.1} parent=1 // pred_fallthru
      _
    // Predicated region
    $region30: #{tpu_custom_call.1} parent=1 // pred_check
      _
    $region31: #{tpu_custom_call.1} parent=1 // pred_check_branch
      %60 = sbr.rel (0) target = $region33
    $region32: #{tpu_custom_call.1} parent=1 // pred_region
      %61 = dma.done [#allocation6], 256
    $region33: #{tpu_custom_call.1} parent=1 // pred_fallthru
      _
    // Predicated region
    $region34: #{tpu_custom_call.1} parent=1 // pred_check
      _
    $region35: #{tpu_custom_call.1} parent=1 // pred_check_branch
      %63 = sbr.rel (0) target = $region37
    $region36: #{tpu_custom_call.1} parent=1 // pred_region
      %64 = dma.done [#allocation6], 512
    $region37: #{tpu_custom_call.1} parent=1 // pred_fallthru
      _
    %v65 = vld [vmem:[#allocation2] sm:$0xff]
    %v66 = vld [vmem:[#allocation2 + $0x8] sm:$0xff]
    %v67 = vld [vmem:[#allocation7] sm:$0xff]
    %v68 = vld [vmem:[#allocation7 + $0x8] sm:$0xff]
    %v69 = vld [vmem:[#allocation7 + $0x10] sm:$0xff]
    %v70 = vld [vmem:[#allocation7 + $0x18] sm:$0xff]
    %v71 = vld [vmem:[%s3] sm:$0x1]
    %v73 = vlaneseq
    %v74 = vshrl.u32 %v73, 7
    %v75 = vsub.s32 0, %v74
    %v76 = vrot.slane %v71, %v75
    %vm78 = vcmask 261120
    %v80 = vsel %vm78, %v65, 0
    %v83 = vsel %vm78, %v66, 0
    %85 = vmatprep.subr.mxu0 0.0
    %86 = vmatpush1.msra.mxu0 %v67
    %87 = vmatprep.subr.mxu0 0.0
    %88 = vmatpush1.msra.mxu0 %v68
    %89 = vmatprep.subr.mxu0 0.0
    %90 = vmatpush1.msra.mxu0 %v69
    %91 = vmatprep.subr.mxu0 0.0
    %92 = vmatpush1.msra.mxu0 %v70
    %93 = vmatprep.subr.mxu0 0.0
    %94 = vmatpush1.msra.mxu0 0.0
    %95 = vmatprep.subr.mxu0 0.0
    %96 = vmatpush1.msra.mxu0 0.0
    %97 = vmatprep.subr.mxu0 0.0
    %98 = vmatpush1.msra.mxu0 0.0
    %99 = vmatprep.subr.mxu0 0.0
    %100 = vmatpush1.msra.mxu0 0.0
    %101 = vmatprep.subr.mxu0 0.0
    %102 = vmatpush1.msra.mxu0 0.0
    %103 = vmatprep.subr.mxu0 0.0
    %104 = vmatpush1.msra.mxu0 0.0
    %105 = vmatprep.subr.mxu0 0.0
    %106 = vmatpush1.msra.mxu0 0.0
    %107 = vmatprep.subr.mxu0 0.0
    %108 = vmatpush1.msra.mxu0 0.0
    %109 = vmatprep.subr.mxu0 0.0
    %110 = vmatpush1.msra.mxu0 0.0
    %111 = vmatprep.subr.mxu0 0.0
    %112 = vmatpush1.msra.mxu0 0.0
    %113 = vmatprep.subr.mxu0 0.0
    %114 = vmatpush1.msra.mxu0 0.0
    %115 = vmatprep.subr.mxu0 0.0
    %116 = vmatpush1.msra.mxu0 0.0
    %117 = vmatprep.subr.mxu0 0.0
    %118 = vmatpush1.msra.mxu0 0.0
    %119 = vmatprep.subr.mxu0 0.0
    %120 = vmatpush1.msra.mxu0 0.0
    %121 = vmatprep.subr.mxu0 0.0
    %122 = vmatpush1.msra.mxu0 0.0
    %123 = vmatprep.subr.mxu0 0.0
    %124 = vmatpush1.msra.mxu0 0.0
    %125 = vmatprep.subr.mxu0 0.0
    %126 = vmatpush1.msra.mxu0 0.0
    %127 = vmatprep.subr.mxu0 0.0
    %128 = vmatpush1.msra.mxu0 0.0
    %129 = vmatprep.subr.mxu0 0.0
    %130 = vmatpush1.msra.mxu0 0.0
    %131 = vmatprep.subr.mxu0 0.0
    %132 = vmatpush1.msra.mxu0 0.0
    %133 = vmatprep.subr.mxu0 0.0
    %134 = vmatpush1.msra.mxu0 0.0
    %135 = vmatprep.subr.mxu0 0.0
    %136 = vmatpush1.msra.mxu0 0.0
    %137 = vmatprep.subr.mxu0 0.0
    %138 = vmatpush1.msra.mxu0 0.0
    %139 = vmatprep.subr.mxu0 0.0
    %140 = vmatpush1.msra.mxu0 0.0
    %141 = vmatprep.subr.mxu0 0.0
    %142 = vmatpush1.msra.mxu0 0.0
    %143 = vmatprep.subr.mxu0 0.0
    %144 = vmatpush1.msra.mxu0 0.0
    %145 = vmatprep.subr.mxu0 0.0
    %146 = vmatpush1.msra.mxu0 0.0
    %147 = vmatprep.subr.mxu0 0.0
    %148 = vmatpush1.msra.mxu0 0.0
    %149 = vmatprep.mubr.f32.mxu0 0.0
    %150 = vmatmul.mubr.f32.gmra.mrb[0].mxu0 %v80
    %v151 = vpop.f32.mrb[0].mxu0
    %v152 = vadd.f32 %v76, %v151
    %v153 = vpop.f32.mrb[0].mxu0
    %154 = vmatprep.mubr.f32.mxu0 0.0
    %155 = vmatmul.mubr.f32.gmra.mrb[0].mxu0 %v83
    %v156 = vpop.f32.mrb[0].mxu0
    %v157 = vadd.f32 %v76, %v156
    %v158 = vpop.f32.mrb[0].mxu0
    %159 = vdwg.mxu0
    %v160 = vld [vmem:[#allocation5] sm:$0xff]
    %v161 = vld [vmem:[#allocation5 + $0x8] sm:$0xff]
    %v162 = vadd.f32 %v152, %v160
    %v163 = vadd.f32 %v157, %v161
    %v164 = vsel %vm78, %v162, 0.0
    %165 = vadd.xlane.f32.xlu0 %v164
    %v166 = vpop.xlane.xlu0 %165
    %v167 = vsel %vm78, %v163, 0.0
    %168 = vadd.xlane.f32.xlu0 %v167
    %v169 = vpop.xlane.xlu0 %168
    %v170 = vrcp.pop 32.0
    %v171 = vmul.f32 %v166, %v170
    %v172 = vmul.f32 %v169, %v170
    %v173 = vsub.f32 %v162, %v171
    %v174 = vsub.f32 %v163, %v172
    %v175 = vmul.f32 %v173, %v173
    %v176 = vmul.f32 %v174, %v174
    %v177 = vsel %vm78, %v175, 0.0
    %178 = vadd.xlane.f32.xlu0 %v177
    %v179 = vpop.xlane.xlu0 %178
    %v180 = vsel %vm78, %v176, 0.0
    %181 = vadd.xlane.f32.xlu0 %v180
    %v182 = vpop.xlane.xlu0 %181
    %v183 = vmul.f32 %v179, %v170
    %v184 = vmul.f32 %v182, %v170
    %v185 = vadd.f32 %v183, 1e-12
    %v186 = vadd.f32 %v184, 1e-12
    %v187 = vrsqrt.pop %v185
    %v188 = vrsqrt.pop %v186
    %v189 = vmul.f32 %v173, %v187
    %v190 = vmul.f32 %v174, %v188
    %v191 = vld [vmem:[%s4] sm:$0x1]
    %v193 = vlaneseq
    %v194 = vshrl.u32 %v193, 7
    %v195 = vsub.s32 0, %v194
    %v196 = vrot.slane %v191, %v195
    %v198 = vmul.f32 %v189, %v196
    %v199 = vmul.f32 %v190, %v196
    %v200 = vld [vmem:[%s5] sm:$0x1]
    %v202 = vlaneseq
    %v203 = vshrl.u32 %v202, 7
    %v204 = vsub.s32 0, %v203
    %v205 = vrot.slane %v200, %v204
    %v207 = vadd.f32 %v198, %v205
    %v208 = vadd.f32 %v199, %v205
    %209 = vst.msk [vmem:[#allocation8] sm:$0xff] %vm78, %v207
    %210 = vst.msk [vmem:[#allocation8 + $0x8] sm:$0xff] %vm78, %v208
    // Predicated region
    $region38: #{tpu_custom_call.1} parent=1 // pred_check
      _
    $region39: #{tpu_custom_call.1} parent=1 // pred_check_branch
      %212 = sbr.rel (0) target = $region41
    $region40: #{tpu_custom_call.1} parent=1 // pred_region
      %s214 = ssub.s32 256, 256
      %215 = vsyncadd [#allocation4], %s214
      %s216 = sshll.u32 [#allocation8], 4
      %s217 = int_to_ptr.vmem [resolvable:$true] %s216
      %222 = dma.vmem_to_hbm [thread:$0]  %s217, 256, %s6, [#allocation4], 128, 128, 8
    $region41: #{tpu_custom_call.1} parent=1 // pred_fallthru
      _
    // Predicated region
    $region42: #{tpu_custom_call.1} parent=1 // pred_check
      _
    $region43: #{tpu_custom_call.1} parent=1 // pred_check_branch
      %224 = sbr.rel (0) target = $region45
    $region44: #{tpu_custom_call.1} parent=1 // pred_region
      %225 = dma.done [#allocation4], 256
    $region45: #{tpu_custom_call.1} parent=1 // pred_fallthru
      _
    %226 = vsyncpa [#allocation3], 1
    %227 = vsyncpa [#allocation6], 1
    %228 = vsyncpa [#allocation4], 1

</llo_original>
